<compile_context>
chip_gen: v7x
topology: tpu7x:2x2x1
jax: 0.10.0
libtpu: 0.0.40
codegen_flags: <defaults>
</compile_context>

<pallas_src>
import math

import jax
import jax.numpy as jnp
from jax.experimental import pallas as pl
from jax.experimental.pallas import tpu as pltpu

# ---- problem sizes (small, consistent with the module's forward) ----
B = 2
C_IN = 4
C_OUT = 8
K = 3
STYLE_DIM = 16
H = W = 16
HW = H * W
CKK = C_IN * K * K
PAD = K // 2                              # F.conv2d(padding=kernel_size // 2)
EPS = 1e-8
NEG_SLOPE = 0.2
OUT_SCALE = 2 ** 0.5                      # StyledConv.scale
LIN_SCALE = 1.0 / math.sqrt(STYLE_DIM)    # EqualLinear.scale (lr_mul = 1)


def styled_conv_kernel(style_ref, linwT_ref, linb_ref, expand_ref, w2_ref,
                       patches_ref, noise_ref, nw_ref, o_ref):
    # style_ref:   (B, STYLE_DIM)        f32
    # linwT_ref:   (STYLE_DIM, C_IN)     f32   EqualLinear weight, transposed
    # linb_ref:    (1, C_IN)             f32
    # expand_ref:  (C_IN, C_IN*K*K)      f32   0/1 selector: repeats s[cin] over K*K taps
    # w2_ref:      (C_OUT, C_IN*K*K)     f32   conv weight, (cin, ky, kx) row order
    # patches_ref: (B, C_IN*K*K, H*W)    bf16  im2col of the padded input (lane-dense 256)
    # noise_ref:   (B, 1, H*W)           f32
    # nw_ref:      (1,) in SMEM          f32   NoiseInjection scalar weight
    # o_ref:       (B, C_OUT, H*W)       f32

    # EqualLinear (activation=None): s = style @ W^T * scale + bias
    s = (jnp.dot(style_ref[...], linwT_ref[...], preferred_element_type=jnp.float32)
         * LIN_SCALE + linb_ref[...])                                        # (B, C_IN)
    # Expand modulation over the K*K taps of each input channel.
    s_rows = jnp.dot(s, expand_ref[...], preferred_element_type=jnp.float32)  # (B, CKK)

    nw = nw_ref[0]                                                            # scalar

    for b in range(B):                                                        # B=2, static unroll
        wm = w2_ref[...] * s_rows[b:b + 1, :]                                 # modulated weight (C_OUT, CKK)
        demod = jax.lax.rsqrt(jnp.sum(wm * wm, axis=1, keepdims=True) + EPS)  # (C_OUT, 1)
        # One 36-deep MXU contraction; bf16 operands, f32 accumulation.
        acc = jnp.dot(wm.astype(jnp.bfloat16), patches_ref[b],
                      preferred_element_type=jnp.float32)                     # (C_OUT, HW)
        # Demodulate (exact after accumulation: per-Cout scalar) + noise injection.
        # TODO(synk): NoiseInjection source not provided; standard StyleGAN2 form assumed
        # (out + weight * noise with a scalar weight).
        out = acc * demod + nw * noise_ref[b]
        # LeakyReLU(0.2) * sqrt(2) with the scale folded into the select constants.
        o_ref[b] = jnp.where(out >= 0.0, out * OUT_SCALE, out * (NEG_SLOPE * OUT_SCALE))


def styled_conv(x, style, conv_w, lin_w, lin_b, noise_w, noise):
    # x: (B, C_IN, H, W)  style: (B, STYLE_DIM)  conv_w: (C_OUT, C_IN, K, K)
    # --- wrapper-side layout plumbing (no compute hoisted out of the kernel) ---
    x_pad = jnp.pad(x, ((0, 0), (0, 0), (PAD, PAD), (PAD, PAD)))
    # im2col: patches[b, cin*K*K + ky*K + kx, h*W + w] = x_pad[b, cin, h+ky, w+kx]
    taps = [x_pad[:, :, ky:ky + H, kx:kx + W] for ky in range(K) for kx in range(K)]
    patches = jnp.stack(taps, axis=2).reshape(B, CKK, HW).astype(jnp.bfloat16)
    w2 = conv_w.reshape(C_OUT, CKK)                                   # same (cin, ky, kx) order
    expand = jnp.repeat(jnp.eye(C_IN, dtype=jnp.float32), K * K, axis=1)   # (C_IN, CKK)

    out = pl.pallas_call(
        styled_conv_kernel,
        out_shape=jax.ShapeDtypeStruct((B, C_OUT, HW), jnp.float32),
        in_specs=[
            pl.BlockSpec(memory_space=pltpu.MemorySpace.VMEM),   # style
            pl.BlockSpec(memory_space=pltpu.MemorySpace.VMEM),   # lin_w^T
            pl.BlockSpec(memory_space=pltpu.MemorySpace.VMEM),   # lin_b
            pl.BlockSpec(memory_space=pltpu.MemorySpace.VMEM),   # expand selector
            pl.BlockSpec(memory_space=pltpu.MemorySpace.VMEM),   # conv weight (C_OUT, CKK)
            pl.BlockSpec(memory_space=pltpu.MemorySpace.VMEM),   # im2col patches (bf16)
            pl.BlockSpec(memory_space=pltpu.MemorySpace.VMEM),   # noise (B, 1, HW)
            pl.BlockSpec(memory_space=pltpu.MemorySpace.SMEM),   # noise weight scalar (1,)
        ],
        out_specs=pl.BlockSpec(memory_space=pltpu.MemorySpace.VMEM),
    )(style, lin_w.T, lin_b.reshape(1, C_IN), expand, w2, patches,
      noise.reshape(B, 1, HW), noise_w.reshape(1))
    return out.reshape(B, C_OUT, H, W)


# ---------------- pure-JAX reference (mirrors the PyTorch math) ----------------
# The conv operands are cast to bf16 (with f32 accumulation) to match the kernel's MXU
# input precision; modulation, demodulation, noise and activation stay in f32.
def reference(x, style, conv_w, lin_w, lin_b, noise_w, noise):
    style_mod = style @ (lin_w * LIN_SCALE).T + lin_b                  # EqualLinear
    wm = conv_w[None] * style_mod[:, None, :, None, None]              # (B, Cout, Cin, K, K)
    demod = jax.lax.rsqrt(jnp.sum(wm * wm, axis=(2, 3, 4)) + EPS)      # (B, Cout)
    xp = jnp.pad(x, ((0, 0), (0, 0), (PAD, PAD), (PAD, PAD))).astype(jnp.bfloat16)
    wm_bf = wm.astype(jnp.bfloat16)
    acc = jnp.zeros((B, C_OUT, H, W), jnp.float32)
    for ky in range(K):
        for kx in range(K):
            acc = acc + jnp.einsum("boc,bchw->bohw", wm_bf[:, :, :, ky, kx],
                                   xp[:, :, ky:ky + H, kx:kx + W],
                                   preferred_element_type=jnp.float32)
    out = acc * demod[:, :, None, None] + noise_w.reshape(()) * noise
    return jnp.where(out >= 0.0, out, NEG_SLOPE * out) * OUT_SCALE


if __name__ == "__main__":
    key = jax.random.PRNGKey(0)
    k1, k2, k3, k4, k5 = jax.random.split(key, 5)

    # inputs
    x = jax.random.normal(k1, (B, C_IN, H, W), dtype=jnp.float32)
    style = jax.random.normal(k2, (B, STYLE_DIM), dtype=jnp.float32)
    # noise=None in the PyTorch forward -> random noise of shape (B, 1, H, W)
    noise = jax.random.normal(k5, (B, 1, H, W), dtype=jnp.float32)

    # deterministic parameters (shapes from the module's __init__)
    conv_w = jax.random.normal(k3, (C_OUT, C_IN, K, K), dtype=jnp.float32)
    lin_w = jax.random.normal(k4, (C_IN, STYLE_DIM), dtype=jnp.float32)  # EqualLinear.weight
    lin_b = jnp.ones((C_IN,), dtype=jnp.float32)                         # bias_init=1
    # NoiseInjection weight is zero-initialized in the module; use a nonzero value here so
    # the noise-injection path is actually exercised by the check.
    noise_w = jnp.full((1,), 0.3, dtype=jnp.float32)

    out = jax.block_until_ready(styled_conv(x, style, conv_w, lin_w, lin_b, noise_w, noise))
    ref = reference(x, style, conv_w, lin_w, lin_b, noise_w, noise)

    assert out.shape == (B, C_OUT, H, W)
    max_err = float(jnp.max(jnp.abs(out - ref)))
    assert jnp.allclose(out, ref, rtol=1e-3, atol=1e-3), max_err
    print("KERNEL_OK")
</pallas_src>

<mosaic_0001>
module attributes {stable_mosaic.version = 11 : i64} {
  func.func @styled_conv_kernel(%arg0: memref<2x16xf32, #tpu.memory_space<vmem>>, %arg1: memref<16x4xf32, #tpu.memory_space<vmem>>, %arg2: memref<1x4xf32, #tpu.memory_space<vmem>>, %arg3: memref<4x36xf32, #tpu.memory_space<vmem>>, %arg4: memref<8x36xf32, #tpu.memory_space<vmem>>, %arg5: memref<2x36x256xbf16, #tpu.memory_space<vmem>>, %arg6: memref<2x1x256xf32, #tpu.memory_space<vmem>>, %arg7: memref<1xf32, #tpu.memory_space<smem>>, %arg8: memref<2x8x256xf32, #tpu.memory_space<vmem>>) attributes {dimension_semantics = [], scalar_prefetch = 0 : i64, scratch_operands = 0 : i64, tpu.core_type = #tpu.core_type<tc>} {
    %c0 = arith.constant 0 : index
    %c0_0 = arith.constant 0 : index
    %0 = vector.load %arg0[%c0, %c0_0] : memref<2x16xf32, #tpu.memory_space<vmem>>, vector<2x16xf32>
    %c0_1 = arith.constant 0 : index
    %c0_2 = arith.constant 0 : index
    %1 = vector.load %arg1[%c0_1, %c0_2] : memref<16x4xf32, #tpu.memory_space<vmem>>, vector<16x4xf32>
    %cst = arith.constant dense<0.000000e+00> : vector<2x4xf32>
    %2 = tpu.matmul %0, %1, %cst {dimension_numbers = #tpu.dot_dimension_numbers<[1], [0], [0], [1], [0, 0, 1, 1], [], []>} : vector<2x16xf32>, vector<16x4xf32>, vector<2x4xf32> -> vector<2x4xf32>
    %cst_3 = arith.constant 2.500000e-01 : f32
    %3 = vector.broadcast %cst_3 : f32 to vector<2x4xf32>
    %4 = arith.mulf %2, %3 : vector<2x4xf32>
    %c0_4 = arith.constant 0 : index
    %c0_5 = arith.constant 0 : index
    %5 = vector.load %arg2[%c0_4, %c0_5] : memref<1x4xf32, #tpu.memory_space<vmem>>, vector<1x4xf32>
    %6 = vector.broadcast %5 : vector<1x4xf32> to vector<2x4xf32>
    %7 = arith.addf %4, %6 : vector<2x4xf32>
    %c0_6 = arith.constant 0 : index
    %c0_7 = arith.constant 0 : index
    %8 = vector.load %arg3[%c0_6, %c0_7] : memref<4x36xf32, #tpu.memory_space<vmem>>, vector<4x36xf32>
    %cst_8 = arith.constant dense<0.000000e+00> : vector<2x36xf32>
    %9 = tpu.matmul %7, %8, %cst_8 {dimension_numbers = #tpu.dot_dimension_numbers<[1], [0], [0], [1], [0, 0, 1, 1], [], []>} : vector<2x4xf32>, vector<4x36xf32>, vector<2x36xf32> -> vector<2x36xf32>
    %c0_9 = arith.constant 0 : index
    %10 = memref.load %arg7[%c0_9] : memref<1xf32, #tpu.memory_space<smem>>
    %c0_10 = arith.constant 0 : index
    %c0_11 = arith.constant 0 : index
    %11 = vector.load %arg4[%c0_10, %c0_11] : memref<8x36xf32, #tpu.memory_space<vmem>>, vector<8x36xf32>
    %12 = vector.extract_strided_slice %9 {offsets = [0, 0], sizes = [1, 36], strides = [1, 1]} : vector<2x36xf32> to vector<1x36xf32>
    %13 = vector.broadcast %12 : vector<1x36xf32> to vector<8x36xf32>
    %14 = arith.mulf %11, %13 : vector<8x36xf32>
    %15 = arith.mulf %14, %14 : vector<8x36xf32>
    %cst_12 = arith.constant dense<0.000000e+00> : vector<8xf32>
    %16 = vector.multi_reduction <add>, %15, %cst_12 [1] : vector<8x36xf32> to vector<8xf32>
    %17 = vector.shape_cast %16 : vector<8xf32> to vector<8x1xf32>
    %cst_13 = arith.constant 9.99999993E-9 : f32
    %18 = vector.broadcast %cst_13 : f32 to vector<8x1xf32>
    %19 = arith.addf %17, %18 : vector<8x1xf32>
    %20 = math.rsqrt %19 : vector<8x1xf32>
    %21 = arith.truncf %14 : vector<8x36xf32> to vector<8x36xbf16>
    %c0_14 = arith.constant 0 : index
    %c0_15 = arith.constant 0 : index
    %c0_16 = arith.constant 0 : index
    %22 = vector.load %arg5[%c0_14, %c0_15, %c0_16] : memref<2x36x256xbf16, #tpu.memory_space<vmem>>, vector<1x36x256xbf16>
    %23 = vector.shape_cast %22 : vector<1x36x256xbf16> to vector<36x256xbf16>
    %cst_17 = arith.constant dense<0.000000e+00> : vector<8x256xf32>
    %24 = tpu.matmul %21, %23, %cst_17 {dimension_numbers = #tpu.dot_dimension_numbers<[1], [0], [0], [1], [0, 0, 1, 1], [], []>} : vector<8x36xbf16>, vector<36x256xbf16>, vector<8x256xf32> -> vector<8x256xf32>
    %25 = vector.broadcast %20 : vector<8x1xf32> to vector<8x256xf32>
    %26 = arith.mulf %24, %25 : vector<8x256xf32>
    %c0_18 = arith.constant 0 : index
    %c0_19 = arith.constant 0 : index
    %c0_20 = arith.constant 0 : index
    %27 = vector.load %arg6[%c0_18, %c0_19, %c0_20] : memref<2x1x256xf32, #tpu.memory_space<vmem>>, vector<1x1x256xf32>
    %28 = vector.shape_cast %27 : vector<1x1x256xf32> to vector<1x256xf32>
    %29 = vector.broadcast %10 : f32 to vector<1x256xf32>
    %30 = arith.mulf %29, %28 : vector<1x256xf32>
    %31 = vector.broadcast %30 : vector<1x256xf32> to vector<8x256xf32>
    %32 = arith.addf %26, %31 : vector<8x256xf32>
    %cst_21 = arith.constant 0.000000e+00 : f32
    %33 = vector.broadcast %cst_21 : f32 to vector<8x256xf32>
    %34 = arith.cmpf oge, %32, %33 : vector<8x256xf32>
    %cst_22 = arith.constant 1.41421354 : f32
    %35 = vector.broadcast %cst_22 : f32 to vector<8x256xf32>
    %36 = arith.mulf %32, %35 : vector<8x256xf32>
    %cst_23 = arith.constant 0.282842726 : f32
    %37 = vector.broadcast %cst_23 : f32 to vector<8x256xf32>
    %38 = arith.mulf %32, %37 : vector<8x256xf32>
    %39 = arith.select %34, %36, %38 : vector<8x256xi1>, vector<8x256xf32>
    %c0_24 = arith.constant 0 : index
    %c0_25 = arith.constant 0 : index
    %c0_26 = arith.constant 0 : index
    %40 = vector.load %arg8[%c0_24, %c0_25, %c0_26] : memref<2x8x256xf32, #tpu.memory_space<vmem>>, vector<1x8x256xf32>
    %41 = vector.shape_cast %40 : vector<1x8x256xf32> to vector<8x256xf32>
    %42 = vector.shape_cast %39 : vector<8x256xf32> to vector<1x8x256xf32>
    tpu.vector_store %arg8[%c0_24, %c0_25, %c0_26], %42 {strides = array<i32>} : memref<2x8x256xf32, #tpu.memory_space<vmem>>, vector<1x8x256xf32>,
    %c0_27 = arith.constant 0 : index
    %c0_28 = arith.constant 0 : index
    %43 = vector.load %arg4[%c0_27, %c0_28] : memref<8x36xf32, #tpu.memory_space<vmem>>, vector<8x36xf32>
    %44 = vector.extract_strided_slice %9 {offsets = [1, 0], sizes = [1, 36], strides = [1, 1]} : vector<2x36xf32> to vector<1x36xf32>
    %45 = vector.broadcast %44 : vector<1x36xf32> to vector<8x36xf32>
    %46 = arith.mulf %43, %45 : vector<8x36xf32>
    %47 = arith.mulf %46, %46 : vector<8x36xf32>
    %cst_29 = arith.constant dense<0.000000e+00> : vector<8xf32>
    %48 = vector.multi_reduction <add>, %47, %cst_29 [1] : vector<8x36xf32> to vector<8xf32>
    %49 = vector.shape_cast %48 : vector<8xf32> to vector<8x1xf32>
    %cst_30 = arith.constant 9.99999993E-9 : f32
    %50 = vector.broadcast %cst_30 : f32 to vector<8x1xf32>
    %51 = arith.addf %49, %50 : vector<8x1xf32>
    %52 = math.rsqrt %51 : vector<8x1xf32>
    %53 = arith.truncf %46 : vector<8x36xf32> to vector<8x36xbf16>
    %c1 = arith.constant 1 : index
    %c0_31 = arith.constant 0 : index
    %c0_32 = arith.constant 0 : index
    %54 = vector.load %arg5[%c1, %c0_31, %c0_32] : memref<2x36x256xbf16, #tpu.memory_space<vmem>>, vector<1x36x256xbf16>
    %55 = vector.shape_cast %54 : vector<1x36x256xbf16> to vector<36x256xbf16>
    %cst_33 = arith.constant dense<0.000000e+00> : vector<8x256xf32>
    %56 = tpu.matmul %53, %55, %cst_33 {dimension_numbers = #tpu.dot_dimension_numbers<[1], [0], [0], [1], [0, 0, 1, 1], [], []>} : vector<8x36xbf16>, vector<36x256xbf16>, vector<8x256xf32> -> vector<8x256xf32>
    %57 = vector.broadcast %52 : vector<8x1xf32> to vector<8x256xf32>
    %58 = arith.mulf %56, %57 : vector<8x256xf32>
    %c1_34 = arith.constant 1 : index
    %c0_35 = arith.constant 0 : index
    %c0_36 = arith.constant 0 : index
    %59 = vector.load %arg6[%c1_34, %c0_35, %c0_36] : memref<2x1x256xf32, #tpu.memory_space<vmem>>, vector<1x1x256xf32>
    %60 = vector.shape_cast %59 : vector<1x1x256xf32> to vector<1x256xf32>
    %61 = vector.broadcast %10 : f32 to vector<1x256xf32>
    %62 = arith.mulf %61, %60 : vector<1x256xf32>
    %63 = vector.broadcast %62 : vector<1x256xf32> to vector<8x256xf32>
    %64 = arith.addf %58, %63 : vector<8x256xf32>
    %cst_37 = arith.constant 0.000000e+00 : f32
    %65 = vector.broadcast %cst_37 : f32 to vector<8x256xf32>
    %66 = arith.cmpf oge, %64, %65 : vector<8x256xf32>
    %cst_38 = arith.constant 1.41421354 : f32
    %67 = vector.broadcast %cst_38 : f32 to vector<8x256xf32>
    %68 = arith.mulf %64, %67 : vector<8x256xf32>
    %cst_39 = arith.constant 0.282842726 : f32
    %69 = vector.broadcast %cst_39 : f32 to vector<8x256xf32>
    %70 = arith.mulf %64, %69 : vector<8x256xf32>
    %71 = arith.select %66, %68, %70 : vector<8x256xi1>, vector<8x256xf32>
    %c1_40 = arith.constant 1 : index
    %c0_41 = arith.constant 0 : index
    %c0_42 = arith.constant 0 : index
    %72 = vector.load %arg8[%c1_40, %c0_41, %c0_42] : memref<2x8x256xf32, #tpu.memory_space<vmem>>, vector<1x8x256xf32>
    %73 = vector.shape_cast %72 : vector<1x8x256xf32> to vector<8x256xf32>
    %74 = vector.shape_cast %71 : vector<8x256xf32> to vector<1x8x256xf32>
    tpu.vector_store %arg8[%c1_40, %c0_41, %c0_42], %74 {strides = array<i32>} : memref<2x8x256xf32, #tpu.memory_space<vmem>>, vector<1x8x256xf32>,
    return
  }
}

</mosaic_0001>

<llo_original>
// kernel: tpu_custom_call.1
$region0: #{tpu_custom_call.1}
  #allocation0 [shape = 'u32[]', space=smem, size = 0x4, offset = 0x4, fixed_abs, tag = 'smem constant byte address 0x4 - core index']
  #allocation1 [shape = 'u32[144,128]{1,0:T(1,128)}', space=vmem, size = 0x12000, scoped, tag = 'internal scratch']
  #allocation2 [shape = 'f32[1]{0:T(128)S(6)}', space=smem, size = 0x200, scoped, tag = 'scoped memory for tpu_custom_call.1']
  %s0 = inlined_call_operand.vmem [shape: f32[2,16], index: 0, kind: input, shape index: {}]
  %s1 = inlined_call_operand.vmem [shape: f32[16,4], index: 1, kind: input, shape index: {}]
  %s2 = inlined_call_operand.vmem [shape: f32[1,4], index: 2, kind: input, shape index: {}]
  %s3 = inlined_call_operand.vmem [shape: f32[4,36], index: 3, kind: input, shape index: {}]
  %s4 = inlined_call_operand.vmem [shape: f32[8,36], index: 4, kind: input, shape index: {}]
  %s5 = inlined_call_operand.vmem [shape: bf16[2,36,256], index: 5, kind: input, shape index: {}]
  %s6 = inlined_call_operand.vmem [shape: f32[2,1,256], index: 6, kind: input, shape index: {}]
  %s7 = inlined_call_operand.<no memory space> [shape: f32[1], index: 7, kind: input, shape index: {}]
  %s8 = inlined_call_operand.hbm [shape: f32[2,8,256], index: 8, kind: output, shape index: {}]
  %s9 = sld [smem:[#allocation0]]
  $region42: #{tpu_custom_call.1} parent=0
    _
  %s11 = ssub.s32 1, %s9
  %s12 = scalar_select 0, %s11, %s9
  %13 = sst [smem:[#allocation2]] %s7
  $region1: #{tpu_custom_call.1} parent=0
    #allocation3 [shape = 'u8[16384]{0}', space=vmem, size = 0x4000, scoped, tag = 'output window, operand 0, single buffered']
    #allocation4 [shape = 's32[1]{0}', space=sflag, size = 0x4, scoped, tag = 'scoped memory for tpu_custom_call.1']
    %14 = vsyncpa [#allocation4], 0
    // Predicated region
    $region2: #{tpu_custom_call.1} parent=1 // pred_check
      _
    $region3: #{tpu_custom_call.1} parent=1 // pred_check_branch
      %16 = sbr.rel (0) target = $region5
    $region4: #{tpu_custom_call.1} parent=1 // pred_region
      _
    $region5: #{tpu_custom_call.1} parent=1 // pred_fallthru
      _
    // Predicated region
    $region6: #{tpu_custom_call.1} parent=1 // pred_check
      _
    $region7: #{tpu_custom_call.1} parent=1 // pred_check_branch
      %18 = sbr.rel (0) target = $region9
    $region8: #{tpu_custom_call.1} parent=1 // pred_region
      _
    $region9: #{tpu_custom_call.1} parent=1 // pred_fallthru
      _
    // Predicated region
    $region10: #{tpu_custom_call.1} parent=1 // pred_check
      _
    $region11: #{tpu_custom_call.1} parent=1 // pred_check_branch
      %20 = sbr.rel (0) target = $region13
    $region12: #{tpu_custom_call.1} parent=1 // pred_region
      _
    $region13: #{tpu_custom_call.1} parent=1 // pred_fallthru
      _
    // Predicated region
    $region14: #{tpu_custom_call.1} parent=1 // pred_check
      _
    $region15: #{tpu_custom_call.1} parent=1 // pred_check_branch
      %22 = sbr.rel (0) target = $region17
    $region16: #{tpu_custom_call.1} parent=1 // pred_region
      _
    $region17: #{tpu_custom_call.1} parent=1 // pred_fallthru
      _
    // Predicated region
    $region18: #{tpu_custom_call.1} parent=1 // pred_check
      _
    $region19: #{tpu_custom_call.1} parent=1 // pred_check_branch
      %24 = sbr.rel (0) target = $region21
    $region20: #{tpu_custom_call.1} parent=1 // pred_region
      _
    $region21: #{tpu_custom_call.1} parent=1 // pred_fallthru
      _
    // Predicated region
    $region22: #{tpu_custom_call.1} parent=1 // pred_check
      _
    $region23: #{tpu_custom_call.1} parent=1 // pred_check_branch
      %26 = sbr.rel (0) target = $region25
    $region24: #{tpu_custom_call.1} parent=1 // pred_region
      _
    $region25: #{tpu_custom_call.1} parent=1 // pred_fallthru
      _
    // Predicated region
    $region26: #{tpu_custom_call.1} parent=1 // pred_check
      _
    $region27: #{tpu_custom_call.1} parent=1 // pred_check_branch
      %28 = sbr.rel (0) target = $region29
    $region28: #{tpu_custom_call.1} parent=1 // pred_region
      _
    $region29: #{tpu_custom_call.1} parent=1 // pred_fallthru
      _
    // Predicated region
    $region30: #{tpu_custom_call.1} parent=1 // pred_check
      _
    $region31: #{tpu_custom_call.1} parent=1 // pred_check_branch
      %30 = sbr.rel (0) target = $region33
    $region32: #{tpu_custom_call.1} parent=1 // pred_region
      _
    $region33: #{tpu_custom_call.1} parent=1 // pred_fallthru
      _
    %v32 = vld [vmem:[%s0] sm:$0x3]
    %v33 = vld [vmem:[%s1] sm:$0xff]
    %v34 = vld [vmem:[%s1 + $0x8] sm:$0xff]
    %vm35 = vcmask 130048
    %v37 = vsel %vm35, %v32, 0
    %39 = vmatprep.subr.mxu0 0.0
    %40 = vmatpush1.msra.mxu0 %v33
    %41 = vmatprep.subr.mxu0 0.0
    %42 = vmatpush1.msra.mxu0 %v34
    %43 = vmatprep.subr.mxu0 0.0
    %44 = vmatpush1.msra.mxu0 0.0
    %45 = vmatprep.subr.mxu0 0.0
    %46 = vmatpush1.msra.mxu0 0.0
    %47 = vmatprep.subr.mxu0 0.0
    %48 = vmatpush1.msra.mxu0 0.0
    %49 = vmatprep.subr.mxu0 0.0
    %50 = vmatpush1.msra.mxu0 0.0
    %51 = vmatprep.subr.mxu0 0.0
    %52 = vmatpush1.msra.mxu0 0.0
    %53 = vmatprep.subr.mxu0 0.0
    %54 = vmatpush1.msra.mxu0 0.0
    %55 = vmatprep.subr.mxu0 0.0
    %56 = vmatpush1.msra.mxu0 0.0
    %57 = vmatprep.subr.mxu0 0.0
    %58 = vmatpush1.msra.mxu0 0.0
    %59 = vmatprep.subr.mxu0 0.0
    %60 = vmatpush1.msra.mxu0 0.0
    %61 = vmatprep.subr.mxu0 0.0
    %62 = vmatpush1.msra.mxu0 0.0
    %63 = vmatprep.subr.mxu0 0.0
    %64 = vmatpush1.msra.mxu0 0.0
    %65 = vmatprep.subr.mxu0 0.0
    %66 = vmatpush1.msra.mxu0 0.0
    %67 = vmatprep.subr.mxu0 0.0
    %68 = vmatpush1.msra.mxu0 0.0
    %69 = vmatprep.subr.mxu0 0.0
    %70 = vmatpush1.msra.mxu0 0.0
    %71 = vmatprep.subr.mxu0 0.0
    %72 = vmatpush1.msra.mxu0 0.0
    %73 = vmatprep.subr.mxu0 0.0
    %74 = vmatpush1.msra.mxu0 0.0
    %75 = vmatprep.subr.mxu0 0.0
    %76 = vmatpush1.msra.mxu0 0.0
    %77 = vmatprep.subr.mxu0 0.0
    %78 = vmatpush1.msra.mxu0 0.0
    %79 = vmatprep.subr.mxu0 0.0
    %80 = vmatpush1.msra.mxu0 0.0
    %81 = vmatprep.subr.mxu0 0.0
    %82 = vmatpush1.msra.mxu0 0.0
    %83 = vmatprep.subr.mxu0 0.0
    %84 = vmatpush1.msra.mxu0 0.0
    %85 = vmatprep.subr.mxu0 0.0
    %86 = vmatpush1.msra.mxu0 0.0
    %87 = vmatprep.subr.mxu0 0.0
    %88 = vmatpush1.msra.mxu0 0.0
    %89 = vmatprep.subr.mxu0 0.0
    %90 = vmatpush1.msra.mxu0 0.0
    %91 = vmatprep.subr.mxu0 0.0
    %92 = vmatpush1.msra.mxu0 0.0
    %93 = vmatprep.subr.mxu0 0.0
    %94 = vmatpush1.msra.mxu0 0.0
    %95 = vmatprep.subr.mxu0 0.0
    %96 = vmatpush1.msra.mxu0 0.0
    %97 = vmatprep.subr.mxu0 0.0
    %98 = vmatpush1.msra.mxu0 0.0
    %99 = vmatprep.subr.mxu0 0.0
    %100 = vmatpush1.msra.mxu0 0.0
    %101 = vmatprep.subr.mxu0 0.0
    %102 = vmatpush1.msra.mxu0 0.0
    %103 = vmatprep.mubr.f32.mxu0 0.0
    %104 = vmatmul.mubr.f32.gmra.mrb[0].mxu0 %v37
    %v105 = vpop.f32.mrb[0].mxu0
    %v106 = vadd.f32 0.0, %v105
    %v107 = vpop.f32.mrb[0].mxu0
    %108 = vdwg.mxu0
    %v109 = vmul.f32 %v106, 0.25
    %v110 = vld [vmem:[%s2] sm:$0x1]
    %v112 = vlaneseq
    %v113 = vshrl.u32 %v112, 7
    %v114 = vsub.s32 0, %v113
    %v115 = vrot.slane %v110, %v114
    %v117 = vadd.f32 %v109, %v115
    %v118 = vld [vmem:[%s3] sm:$0xf]
    %vm119 = vcmask 31744
    %v121 = vsel %vm119, %v117, 0
    %vm123 = vcmask 1043456
    %v125 = vsel %vm123, %v118, 0
    %127 = vmatprep.subr.mxu0 0.0
    %128 = vmatpush1.msra.mxu0 %v125
    %129 = vmatprep.subr.mxu0 0.0
    %130 = vmatpush1.msra.mxu0 0.0
    %131 = vmatprep.subr.mxu0 0.0
    %132 = vmatpush1.msra.mxu0 0.0
    %133 = vmatprep.subr.mxu0 0.0
    %134 = vmatpush1.msra.mxu0 0.0
    %135 = vmatprep.subr.mxu0 0.0
    %136 = vmatpush1.msra.mxu0 0.0
    %137 = vmatprep.subr.mxu0 0.0
    %138 = vmatpush1.msra.mxu0 0.0
    %139 = vmatprep.subr.mxu0 0.0
    %140 = vmatpush1.msra.mxu0 0.0
    %141 = vmatprep.subr.mxu0 0.0
    %142 = vmatpush1.msra.mxu0 0.0
    %143 = vmatprep.subr.mxu0 0.0
    %144 = vmatpush1.msra.mxu0 0.0
    %145 = vmatprep.subr.mxu0 0.0
    %146 = vmatpush1.msra.mxu0 0.0
    %147 = vmatprep.subr.mxu0 0.0
    %148 = vmatpush1.msra.mxu0 0.0
    %149 = vmatprep.subr.mxu0 0.0
    %150 = vmatpush1.msra.mxu0 0.0
    %151 = vmatprep.subr.mxu0 0.0
    %152 = vmatpush1.msra.mxu0 0.0
    %153 = vmatprep.subr.mxu0 0.0
    %154 = vmatpush1.msra.mxu0 0.0
    %155 = vmatprep.subr.mxu0 0.0
    %156 = vmatpush1.msra.mxu0 0.0
    %157 = vmatprep.subr.mxu0 0.0
    %158 = vmatpush1.msra.mxu0 0.0
    %159 = vmatprep.subr.mxu0 0.0
    %160 = vmatpush1.msra.mxu0 0.0
    %161 = vmatprep.subr.mxu0 0.0
    %162 = vmatpush1.msra.mxu0 0.0
    %163 = vmatprep.subr.mxu0 0.0
    %164 = vmatpush1.msra.mxu0 0.0
    %165 = vmatprep.subr.mxu0 0.0
    %166 = vmatpush1.msra.mxu0 0.0
    %167 = vmatprep.subr.mxu0 0.0
    %168 = vmatpush1.msra.mxu0 0.0
    %169 = vmatprep.subr.mxu0 0.0
    %170 = vmatpush1.msra.mxu0 0.0
    %171 = vmatprep.subr.mxu0 0.0
    %172 = vmatpush1.msra.mxu0 0.0
    %173 = vmatprep.subr.mxu0 0.0
    %174 = vmatpush1.msra.mxu0 0.0
    %175 = vmatprep.subr.mxu0 0.0
    %176 = vmatpush1.msra.mxu0 0.0
    %177 = vmatprep.subr.mxu0 0.0
    %178 = vmatpush1.msra.mxu0 0.0
    %179 = vmatprep.subr.mxu0 0.0
    %180 = vmatpush1.msra.mxu0 0.0
    %181 = vmatprep.subr.mxu0 0.0
    %182 = vmatpush1.msra.mxu0 0.0
    %183 = vmatprep.subr.mxu0 0.0
    %184 = vmatpush1.msra.mxu0 0.0
    %185 = vmatprep.subr.mxu0 0.0
    %186 = vmatpush1.msra.mxu0 0.0
    %187 = vmatprep.subr.mxu0 0.0
    %188 = vmatpush1.msra.mxu0 0.0
    %189 = vmatprep.subr.mxu0 0.0
    %190 = vmatpush1.msra.mxu0 0.0
    %191 = vmatprep.mubr.f32.mxu0 0.0
    %192 = vmatmul.mubr.f32.gmra.mrb[0].mxu0 %v121
    %v193 = vpop.f32.mrb[0].mxu0
    %v194 = vadd.f32 0.0, %v193
    %v195 = vpop.f32.mrb[0].mxu0
    %196 = vdwg.mxu0
    %s197 = sld [smem:[#allocation2]]
    %v198 = vld [vmem:[%s4] sm:$0xff]
    %v199 = vlaneseq
    %v200 = vshrl.u32 %v199, 7
    %v201 = vsub.s32 0, %v200
    %v202 = vrot.slane %v194, %v201
    %v203 = vmul.f32 %v198, %v202
    %v204 = vmul.f32 %v203, %v203
    %vm205 = vcmask 293888
    %v206 = vsel %vm205, %v204, 0.0
    %207 = vadd.xlane.f32.xlu0 %v206
    %v208 = vpop.xlane.xlu0 %207
    %v209 = vadd.f32 %v208, 1e-08
    %v210 = vrsqrt.pop %v209
    %v211 = vpack.c.bf16 %v203, %v203
    %v212 = vld [vmem:[%s5] sm:$0xff]
    %v213 = vld [vmem:[%s5 + $0x8] sm:$0xff]
    %v214 = vld [vmem:[%s5 + $0x10] sm:$0xff]
    %v215 = vld [vmem:[%s5 + $0x18] sm:$0xff]
    %v216 = vld [vmem:[%s5 + $0x20] sm:$0x33]
    %v222 = vunpack.c.l.b16 %v212
    %v223 = vunpack.c.h.b16 %v212
    %v224 = vunpack.c.l.b16 %v213
    %v225 = vunpack.c.h.b16 %v213
    %v226 = vunpack.c.l.b16 %v214
    %v227 = vunpack.c.h.b16 %v214
    %v228 = vunpack.c.l.b16 %v215
    %v229 = vunpack.c.h.b16 %v215
    %v230 = vunpack.c.l.b16 %v216
    %v231 = vunpack.c.h.b16 %v216
    %v232 = vpack.c.b16 %v224, %v222
    %v233 = vpack.c.b16 %v225, %v223
    %v234 = vpack.c.b16 %v228, %v226
    %v235 = vpack.c.b16 %v229, %v227
    %v236 = vpack.c.b16 %v230, %v230
    %v237 = vpack.c.b16 %v231, %v231
    %v243 = vsel %vm205, %v211, 0
    %vm245 = vcmask 1041408
    %v247 = vsel %vm245, %v236, 0
    %v250 = vsel %vm245, %v237, 0
    %252 = vmatprep.subr.bf16.mxu0 %v233
    %253 = vmatpush1.bf16.msra.mxu0 %v232
    %254 = vmatprep.subr.bf16.mxu0 %v235
    %255 = vmatpush1.bf16.msra.mxu0 %v234
    %256 = vmatprep.subr.bf16.mxu0 %v250
    %257 = vmatpush1.bf16.msra.mxu0 %v247
    %258 = vmatprep.subr.bf16.mxu0 0
    %259 = vmatpush1.bf16.msra.mxu0 0
    %260 = vmatprep.subr.bf16.mxu0 0
    %261 = vmatpush1.bf16.msra.mxu0 0
    %262 = vmatprep.subr.bf16.mxu0 0
    %263 = vmatpush1.bf16.msra.mxu0 0
    %264 = vmatprep.subr.bf16.mxu0 0
    %265 = vmatpush1.bf16.msra.mxu0 0
    %266 = vmatprep.subr.bf16.mxu0 0
    %267 = vmatpush1.bf16.msra.mxu0 0
    %268 = vmatprep.subr.bf16.mxu0 0
    %269 = vmatpush1.bf16.msra.mxu0 0
    %270 = vmatprep.subr.bf16.mxu0 0
    %271 = vmatpush1.bf16.msra.mxu0 0
    %272 = vmatprep.subr.bf16.mxu0 0
    %273 = vmatpush1.bf16.msra.mxu0 0
    %274 = vmatprep.subr.bf16.mxu0 0
    %275 = vmatpush1.bf16.msra.mxu0 0
    %276 = vmatprep.subr.bf16.mxu0 0
    %277 = vmatpush1.bf16.msra.mxu0 0
    %278 = vmatprep.subr.bf16.mxu0 0
    %279 = vmatpush1.bf16.msra.mxu0 0
    %280 = vmatprep.subr.bf16.mxu0 0
    %281 = vmatpush1.bf16.msra.mxu0 0
    %282 = vmatprep.subr.bf16.mxu0 0
    %283 = vmatpush1.bf16.msra.mxu0 0
    %284 = vmatprep.mubr.bf16.mxu0 0
    %285 = vmatmul.mubr.bf16.gmra.mrb[0].mxu0 %v243
    %v286 = vpop.f32.mrb[0].mxu0
    %v287 = vadd.f32 0.0, %v286
    %v288 = vpop.f32.mrb[0].mxu0
    %v289 = vadd.f32 0.0, %v288
    %v290 = vpop.f32.mrb[0].mxu0
    %v291 = vpop.f32.mrb[0].mxu0
    %292 = vdwg.mxu0
    %v293 = vmul.f32 %v287, %v210
    %v294 = vmul.f32 %v289, %v210
    %v295 = vld [vmem:[%s6] sm:$0x3]
    %v296 = vstv %s197
    %v297 = vmul.f32 %v296, %v295
    %v299 = vlaneseq
    %v300 = vshrl.u32 %v299, 7
    %v301 = vsub.s32 0, %v300
    %v302 = vrot.slane %v297, %v301
    %v303 = vlaneseq
    %v304 = vshrl.u32 %v303, 7
    %v305 = vsub.s32 1, %v304
    %v306 = vrot.slane %v297, %v305
    %v309 = vadd.f32 %v293, %v302
    %v310 = vadd.f32 %v294, %v306
    %vm311 = vcmp.ge.f32.partialorder %v309, 0.0
    %vm312 = vcmp.ge.f32.partialorder %v310, 0.0
    %v313 = vmul.f32 %v309, 1.4142135
    %v314 = vmul.f32 %v310, 1.4142135
    %v315 = vmul.f32 %v309, 0.28284273
    %v316 = vmul.f32 %v310, 0.28284273
    %v317 = vsel %vm311, %v313, %v315
    %v318 = vsel %vm312, %v314, %v316
    %319 = vst [vmem:[#allocation3] sm:$0xff] %v317
    %320 = vst [vmem:[#allocation3 + $0x8] sm:$0xff] %v318
    %v321 = vld [vmem:[%s4] sm:$0xff]
    %v322 = vlaneseq
    %v323 = vshrl.u32 %v322, 7
    %v324 = vsub.s32 1, %v323
    %v325 = vrot.slane %v194, %v324
    %v326 = vmul.f32 %v321, %v325
    %v327 = vmul.f32 %v326, %v326
    %v328 = vsel %vm205, %v327, 0.0
    %329 = vadd.xlane.f32.xlu0 %v328
    %v330 = vpop.xlane.xlu0 %329
    %v331 = vadd.f32 %v330, 1e-08
    %v332 = vrsqrt.pop %v331
    %v333 = vpack.c.bf16 %v326, %v326
    %s334 = scalar_lea.vmem %s5, 40
    %v335 = vld [vmem:[%s334] sm:$0xff]
    %v336 = vld [vmem:[%s334 + $0x8] sm:$0xff]
    %v337 = vld [vmem:[%s334 + $0x10] sm:$0xff]
    %v338 = vld [vmem:[%s334 + $0x18] sm:$0xff]
    %v339 = vld [vmem:[%s334 + $0x20] sm:$0x33]
    %v345 = vunpack.c.l.b16 %v335
    %v346 = vunpack.c.h.b16 %v335
    %v347 = vunpack.c.l.b16 %v336
    %v348 = vunpack.c.h.b16 %v336
    %v349 = vunpack.c.l.b16 %v337
    %v350 = vunpack.c.h.b16 %v337
    %v351 = vunpack.c.l.b16 %v338
    %v352 = vunpack.c.h.b16 %v338
    %v353 = vunpack.c.l.b16 %v339
    %v354 = vunpack.c.h.b16 %v339
    %v355 = vpack.c.b16 %v347, %v345
    %v356 = vpack.c.b16 %v348, %v346
    %v357 = vpack.c.b16 %v351, %v349
    %v358 = vpack.c.b16 %v352, %v350
    %v359 = vpack.c.b16 %v353, %v353
    %v360 = vpack.c.b16 %v354, %v354
    %v366 = vsel %vm205, %v333, 0
    %v369 = vsel %vm245, %v359, 0
    %v372 = vsel %vm245, %v360, 0
    %374 = vmatprep.subr.bf16.mxu0 %v356
    %375 = vmatpush1.bf16.msra.mxu0 %v355
    %376 = vmatprep.subr.bf16.mxu0 %v358
    %377 = vmatpush1.bf16.msra.mxu0 %v357
    %378 = vmatprep.subr.bf16.mxu0 %v372
    %379 = vmatpush1.bf16.msra.mxu0 %v369
    %380 = vmatprep.subr.bf16.mxu0 0
    %381 = vmatpush1.bf16.msra.mxu0 0
    %382 = vmatprep.subr.bf16.mxu0 0
    %383 = vmatpush1.bf16.msra.mxu0 0
    %384 = vmatprep.subr.bf16.mxu0 0
    %385 = vmatpush1.bf16.msra.mxu0 0
    %386 = vmatprep.subr.bf16.mxu0 0
    %387 = vmatpush1.bf16.msra.mxu0 0
    %388 = vmatprep.subr.bf16.mxu0 0
    %389 = vmatpush1.bf16.msra.mxu0 0
    %390 = vmatprep.subr.bf16.mxu0 0
    %391 = vmatpush1.bf16.msra.mxu0 0
    %392 = vmatprep.subr.bf16.mxu0 0
    %393 = vmatpush1.bf16.msra.mxu0 0
    %394 = vmatprep.subr.bf16.mxu0 0
    %395 = vmatpush1.bf16.msra.mxu0 0
    %396 = vmatprep.subr.bf16.mxu0 0
    %397 = vmatpush1.bf16.msra.mxu0 0
    %398 = vmatprep.subr.bf16.mxu0 0
    %399 = vmatpush1.bf16.msra.mxu0 0
    %400 = vmatprep.subr.bf16.mxu0 0
    %401 = vmatpush1.bf16.msra.mxu0 0
    %402 = vmatprep.subr.bf16.mxu0 0
    %403 = vmatpush1.bf16.msra.mxu0 0
    %404 = vmatprep.subr.bf16.mxu0 0
    %405 = vmatpush1.bf16.msra.mxu0 0
    %406 = vmatprep.mubr.bf16.mxu0 0
    %407 = vmatmul.mubr.bf16.gmra.mrb[0].mxu0 %v366
    %v408 = vpop.f32.mrb[0].mxu0
    %v409 = vadd.f32 0.0, %v408
    %v410 = vpop.f32.mrb[0].mxu0
    %v411 = vadd.f32 0.0, %v410
    %v412 = vpop.f32.mrb[0].mxu0
    %v413 = vpop.f32.mrb[0].mxu0
    %414 = vdwg.mxu0
    %v415 = vmul.f32 %v409, %v332
    %v416 = vmul.f32 %v411, %v332
    %s417 = scalar_lea.vmem %s6, 2
    %v418 = vld [vmem:[%s417] sm:$0x3]
    %v419 = vmul.f32 %v296, %v418
    %v421 = vlaneseq
    %v422 = vshrl.u32 %v421, 7
    %v423 = vsub.s32 0, %v422
    %v424 = vrot.slane %v419, %v423
    %v425 = vlaneseq
    %v426 = vshrl.u32 %v425, 7
    %v427 = vsub.s32 1, %v426
    %v428 = vrot.slane %v419, %v427
    %v431 = vadd.f32 %v415, %v424
    %v432 = vadd.f32 %v416, %v428
    %vm433 = vcmp.ge.f32.partialorder %v431, 0.0
    %vm434 = vcmp.ge.f32.partialorder %v432, 0.0
    %v435 = vmul.f32 %v431, 1.4142135
    %v436 = vmul.f32 %v432, 1.4142135
    %v437 = vmul.f32 %v431, 0.28284273
    %v438 = vmul.f32 %v432, 0.28284273
    %v439 = vsel %vm433, %v435, %v437
    %v440 = vsel %vm434, %v436, %v438
    %s441 = scalar_lea.vmem [#allocation3], 16
    %442 = vst [vmem:[%s441] sm:$0xff] %v439
    %443 = vst [vmem:[%s441 + $0x8] sm:$0xff] %v440
    // Predicated region
    $region34: #{tpu_custom_call.1} parent=1 // pred_check
      _
    $region35: #{tpu_custom_call.1} parent=1 // pred_check_branch
      %445 = sbr.rel (0) target = $region37
    $region36: #{tpu_custom_call.1} parent=1 // pred_region
      %s447 = ssub.s32 512, 512
      %448 = vsyncadd [#allocation4], %s447
      %s449 = sshll.u32 [#allocation3], 4
      %s450 = int_to_ptr.vmem [resolvable:$true] %s449
      %455 = dma.vmem_to_hbm [thread:$0]  %s450, 512, %s8, [#allocation4], 256, 256, 16
    $region37: #{tpu_custom_call.1} parent=1 // pred_fallthru
      _
    // Predicated region
    $region38: #{tpu_custom_call.1} parent=1 // pred_check
      _
    $region39: #{tpu_custom_call.1} parent=1 // pred_check_branch
      %457 = sbr.rel (0) target = $region41
    $region40: #{tpu_custom_call.1} parent=1 // pred_region
      %458 = dma.done [#allocation4], 512
    $region41: #{tpu_custom_call.1} parent=1 // pred_fallthru
      _
    %459 = vsyncpa [#allocation4], 1

</llo_original>
